<compile_context>
chip_gen: v6e
topology: v6e:2x2x1
jax: 0.10.0
libtpu: 0.0.40
codegen_flags: <defaults>
</compile_context>

<pallas_src>
import functools

import jax
import jax.numpy as jnp
from jax import lax
from jax.experimental import pallas as pl
from jax.experimental.pallas import tpu as pltpu
import numpy as np


def _round_up(x, m):
    return (x + m - 1) // m * m


def _largest_divisor_at_most(n, cap):
    d = max(1, min(cap, n))
    while n % d:
        d -= 1
    return d


# -----------------------------------------------------------------------------
# Kernel 1: GRU recurrence (sequential over time chunks)
# -----------------------------------------------------------------------------
def gru_kernel(x_ref, h0_ref, wih_ref, whh_ref, bih_ref, bhh_ref,
               hs_ref, hlast_ref):
    T, Bp, H = x_ref.shape          # (T_CHUNK, B_pad, H), all static
    c = pl.program_id(0)

    @pl.when(c == 0)
    def _():
        hlast_ref[...] = h0_ref[...]

    wih = wih_ref[...]              # (H, 3H) bf16
    whh = whh_ref[...]              # (H, 3H) bf16
    bih = bih_ref[...]              # (1, 3H) f32
    bhh = bhh_ref[...]              # (1, 3H) f32

    # ReLU (F.relu(embedding(input))) in f32, then one wide MXU matmul for the
    # input-side gate pre-activations of the whole chunk.
    x = jnp.maximum(x_ref[...], 0.0)                                  # (T, Bp, H)
    gi = jnp.dot(x.reshape(T * Bp, H).astype(jnp.bfloat16), wih,
                 preferred_element_type=jnp.float32) + bih            # (T*Bp, 3H)
    gi = gi.reshape(T, Bp, 3 * H)

    h = hlast_ref[...]                                                # (Bp, H) f32
    # Statically unrolled recurrence over the chunk (trace-time unroll).
    for t in range(T):
        gh = jnp.dot(h.astype(jnp.bfloat16), whh,
                     preferred_element_type=jnp.float32) + bhh        # (Bp, 3H)
        g = gi[t]
        r = jax.nn.sigmoid(g[:, 0:H] + gh[:, 0:H])
        z = jax.nn.sigmoid(g[:, H:2 * H] + gh[:, H:2 * H])
        n = jnp.tanh(g[:, 2 * H:3 * H] + r * gh[:, 2 * H:3 * H])
        h = (1.0 - z) * n + z * h
        hs_ref[t] = h
    hlast_ref[...] = h


# -----------------------------------------------------------------------------
# Kernel 2: output projection + log-softmax (batched, parallel over rows)
# -----------------------------------------------------------------------------
def proj_logsoftmax_kernel(h_ref, wout_ref, bout_ref, out_ref, *, v_real):
    h = h_ref[...].astype(jnp.bfloat16)                               # (TM, H)
    logits = jnp.dot(h, wout_ref[...],
                     preferred_element_type=jnp.float32) + bout_ref[...]
    # Mask padded vocab lanes so they don't affect max / sum-exp.
    lane = lax.broadcasted_iota(jnp.int32, logits.shape, 1)
    logits = jnp.where(lane < v_real, logits, -jnp.inf)
    m = jnp.max(logits, axis=-1, keepdims=True)
    s = jnp.sum(jnp.exp(logits - m), axis=-1, keepdims=True)
    out_ref[...] = logits - (m + jnp.log(s))
    # NOTE: for vocab-sized V (e.g. 32k) / large H, tile W_out along V with a
    # second grid axis and a two-pass (or online) log-softmax, and raise
    # vmem_limit_bytes; not needed at these toy shapes.


# -----------------------------------------------------------------------------
# Wrapper: DecoderRNN.forward(input, hidden, encoder_outputs)
# -----------------------------------------------------------------------------
def decoder_rnn_forward(tokens, hidden, encoder_outputs, params, *, t_chunk=4):
    del encoder_outputs  # unused by the module, kept for signature parity
    B, S = tokens.shape
    H = params["W_ih_cat"].shape[0]
    V = params["W_out"].shape[1]

    B_pad = _round_up(B, 8)         # fill sublanes
    V_pad = _round_up(V, 128)       # lane-dense output stores
    tc = _largest_divisor_at_most(S, t_chunk)

    # Glue: embedding lookup (gather) + time-major layout + batch padding.
    emb = jnp.take(params["emb"], tokens, axis=0).astype(jnp.float32)   # (B, S, H)
    x_tm = jnp.transpose(emb, (1, 0, 2))                                # (S, B, H)
    x_tm = jnp.pad(x_tm, ((0, 0), (0, B_pad - B), (0, 0)))
    h0 = jnp.pad(hidden[0].astype(jnp.float32), ((0, B_pad - B), (0, 0)))

    w_ih = params["W_ih_cat"].astype(jnp.bfloat16)
    w_hh = params["W_hh_cat"].astype(jnp.bfloat16)
    b_ih = params["b_ih_cat"].astype(jnp.float32)
    b_hh = params["b_hh_cat"].astype(jnp.float32)

    # --- Kernel 1: GRU recurrence ------------------------------------------
    hs, h_last = pl.pallas_call(
        gru_kernel,
        out_shape=(
            jax.ShapeDtypeStruct((S, B_pad, H), jnp.float32),
            jax.ShapeDtypeStruct((B_pad, H), jnp.float32),
        ),
        grid_spec=pltpu.PrefetchScalarGridSpec(
            num_scalar_prefetch=0,
            grid=(S // tc,),
            in_specs=[
                pl.BlockSpec((tc, B_pad, H), lambda c: (c, 0, 0)),    # x chunk
                pl.BlockSpec((B_pad, H), lambda c: (0, 0)),           # h0
                pl.BlockSpec((H, 3 * H), lambda c: (0, 0)),           # W_ih_cat
                pl.BlockSpec((H, 3 * H), lambda c: (0, 0)),           # W_hh_cat
                pl.BlockSpec((1, 3 * H), lambda c: (0, 0)),           # b_ih_cat
                pl.BlockSpec((1, 3 * H), lambda c: (0, 0)),           # b_hh_cat
            ],
            out_specs=[
                pl.BlockSpec((tc, B_pad, H), lambda c: (c, 0, 0)),    # all hidden states
                pl.BlockSpec((B_pad, H), lambda c: (0, 0)),           # resident carry / final h
            ],
        ),
        compiler_params=pltpu.CompilerParams(
            dimension_semantics=("arbitrary",)),
    )(x_tm, h0, w_ih, w_hh, b_ih, b_hh)

    # --- Kernel 2: projection + log-softmax (batched over S*B_pad rows) -----
    M = S * B_pad
    TM = M if M <= 128 else 128
    M_pad = _round_up(M, TM)
    hs2d = jnp.pad(hs.reshape(M, H), ((0, M_pad - M), (0, 0)))

    w_out = jnp.pad(params["W_out"], ((0, 0), (0, V_pad - V))).astype(jnp.bfloat16)
    b_out = jnp.pad(params["b_out"], ((0, 0), (0, V_pad - V))).astype(jnp.float32)

    logp2d = pl.pallas_call(
        functools.partial(proj_logsoftmax_kernel, v_real=V),
        out_shape=jax.ShapeDtypeStruct((M_pad, V_pad), jnp.float32),
        grid_spec=pltpu.PrefetchScalarGridSpec(
            num_scalar_prefetch=0,
            grid=(M_pad // TM,),
            in_specs=[
                pl.BlockSpec((TM, H), lambda i: (i, 0)),              # hidden rows
                pl.BlockSpec((H, V_pad), lambda i: (0, 0)),           # W_out
                pl.BlockSpec((1, V_pad), lambda i: (0, 0)),           # b_out
            ],
            out_specs=pl.BlockSpec((TM, V_pad), lambda i: (i, 0)),
        ),
        compiler_params=pltpu.CompilerParams(
            dimension_semantics=("parallel",)),
    )(hs2d, w_out, b_out)

    logp = logp2d[:M].reshape(S, B_pad, V_pad)[:, :B, :V]
    output = jnp.transpose(logp, (1, 0, 2))          # (B, S, V)  batch_first
    h_out = h_last[:B][None]                         # (1, B, H)
    return output, h_out, 0


# -----------------------------------------------------------------------------
# Params + pure-JAX reference (mirrors the PyTorch module in f32)
# -----------------------------------------------------------------------------
def make_params(key, hidden_size, output_size):
    H, V = hidden_size, output_size
    k = jax.random.split(key, 8)
    bound = 1.0 / np.sqrt(H)
    u = lambda kk, shape: jax.random.uniform(kk, shape, jnp.float32, -bound, bound)
    return {
        "emb": jax.random.normal(k[0], (V, H), jnp.float32),
        # fused / pre-transposed: (in_features, 3H), gate order [r, z, n]
        "W_ih_cat": u(k[1], (H, 3 * H)),
        "W_hh_cat": u(k[2], (H, 3 * H)),
        "b_ih_cat": u(k[3], (1, 3 * H)),
        "b_hh_cat": u(k[4], (1, 3 * H)),
        "W_out": u(k[5], (H, V)),
        "b_out": u(k[6], (1, V)),
    }


def reference_forward(tokens, hidden, params):
    emb = jnp.take(params["emb"], tokens, axis=0)           # (B, S, H)
    x = jnp.maximum(emb, 0.0)
    x_tm = jnp.transpose(x, (1, 0, 2))                      # (S, B, H)
    H = params["W_ih_cat"].shape[0]

    def step(h, x_t):
        gi = x_t @ params["W_ih_cat"] + params["b_ih_cat"]
        gh = h @ params["W_hh_cat"] + params["b_hh_cat"]
        r = jax.nn.sigmoid(gi[:, 0:H] + gh[:, 0:H])
        z = jax.nn.sigmoid(gi[:, H:2 * H] + gh[:, H:2 * H])
        n = jnp.tanh(gi[:, 2 * H:] + r * gh[:, 2 * H:])
        h_new = (1.0 - z) * n + z * h
        return h_new, h_new

    hT, hs = lax.scan(step, hidden[0], x_tm)                # hs: (S, B, H)
    logits = hs @ params["W_out"] + params["b_out"]
    logp = jax.nn.log_softmax(logits, axis=-1)
    return jnp.transpose(logp, (1, 0, 2)), hT[None]


if __name__ == "__main__":
    B, S, H, V = 2, 8, 32, 16   # batch, seq, hidden_size, output_size (vocab)
    key = jax.random.PRNGKey(0)
    kp, kt, kh, ke = jax.random.split(key, 4)

    params = make_params(kp, H, V)
    tokens = jax.random.randint(kt, (B, S), 0, V, dtype=jnp.int32)
    hidden0 = jax.random.normal(kh, (1, B, H), jnp.float32)
    encoder_outputs = jax.random.normal(ke, (B, S, H), jnp.float32)  # unused by module

    out, h_last, attn = decoder_rnn_forward(tokens, hidden0, encoder_outputs, params)
    out = jax.block_until_ready(out)
    h_last = jax.block_until_ready(h_last)

    ref_out, ref_h = reference_forward(tokens, hidden0, params)
    # bf16 MXU operands in the kernel vs f32 reference -> modest tolerance.
    np.testing.assert_allclose(np.asarray(out), np.asarray(ref_out), rtol=5e-2, atol=5e-2)
    np.testing.assert_allclose(np.asarray(h_last), np.asarray(ref_h), rtol=5e-2, atol=5e-2)
    assert out.shape == (B, S, V) and h_last.shape == (1, B, H) and attn == 0

    print("KERNEL_OK")
</pallas_src>

<mosaic_0001>
module attributes {stable_mosaic.version = 11 : i64} {
  func.func @gru_kernel(%arg0: i32, %arg1: memref<4x8x32xf32, #tpu.memory_space<vmem>>, %arg2: memref<8x32xf32, #tpu.memory_space<vmem>>, %arg3: memref<32x96xbf16, #tpu.memory_space<vmem>>, %arg4: memref<32x96xbf16, #tpu.memory_space<vmem>>, %arg5: memref<1x96xf32, #tpu.memory_space<vmem>>, %arg6: memref<1x96xf32, #tpu.memory_space<vmem>>, %arg7: memref<4x8x32xf32, #tpu.memory_space<vmem>>, %arg8: memref<8x32xf32, #tpu.memory_space<vmem>>) attributes {dimension_semantics = [#tpu.dimension_semantics<arbitrary>], iteration_bounds = array<i64: 2>, scalar_prefetch = 0 : i64, scratch_operands = 0 : i64, tpu.core_type = #tpu.core_type<tc>, window_params = [{transform_indices = @transform_0, window_bounds = array<i64: 4, 8, 32>}, {pipeline_mode = #tpu.pipeline_mode<synchronous>, transform_indices = @transform_1, window_bounds = array<i64: 8, 32>}, {pipeline_mode = #tpu.pipeline_mode<synchronous>, transform_indices = @transform_2, window_bounds = array<i64: 32, 96>}, {pipeline_mode = #tpu.pipeline_mode<synchronous>, transform_indices = @transform_3, window_bounds = array<i64: 32, 96>}, {pipeline_mode = #tpu.pipeline_mode<synchronous>, transform_indices = @transform_4, window_bounds = array<i64: 1, 96>}, {pipeline_mode = #tpu.pipeline_mode<synchronous>, transform_indices = @transform_5, window_bounds = array<i64: 1, 96>}, {transform_indices = @transform_6, window_bounds = array<i64: 4, 8, 32>}, {pipeline_mode = #tpu.pipeline_mode<synchronous>, transform_indices = @transform_7, window_bounds = array<i64: 8, 32>}]} {
    %c0_i32 = arith.constant 0 : i32
    %0 = arith.cmpi eq, %arg0, %c0_i32 : i32
    %1 = arith.extui %0 : i1 to i32
    %c0_i32_0 = arith.constant 0 : i32
    %2 = arith.cmpi ne, %1, %c0_i32_0 : i32
    scf.if %2 {
      %c0_41 = arith.constant 0 : index
      %c0_42 = arith.constant 0 : index
      %158 = vector.load %arg2[%c0_41, %c0_42] : memref<8x32xf32, #tpu.memory_space<vmem>>, vector<8x32xf32>
      %c0_43 = arith.constant 0 : index
      %c0_44 = arith.constant 0 : index
      %159 = vector.load %arg8[%c0_43, %c0_44] : memref<8x32xf32, #tpu.memory_space<vmem>>, vector<8x32xf32>
      tpu.vector_store %arg8[%c0_43, %c0_44], %158 {strides = array<i32>} : memref<8x32xf32, #tpu.memory_space<vmem>>, vector<8x32xf32>,
    } else {
    }
    %c0 = arith.constant 0 : index
    %c0_1 = arith.constant 0 : index
    %3 = vector.load %arg3[%c0, %c0_1] : memref<32x96xbf16, #tpu.memory_space<vmem>>, vector<32x96xbf16>
    %c0_2 = arith.constant 0 : index
    %c0_3 = arith.constant 0 : index
    %4 = vector.load %arg4[%c0_2, %c0_3] : memref<32x96xbf16, #tpu.memory_space<vmem>>, vector<32x96xbf16>
    %c0_4 = arith.constant 0 : index
    %c0_5 = arith.constant 0 : index
    %5 = vector.load %arg5[%c0_4, %c0_5] : memref<1x96xf32, #tpu.memory_space<vmem>>, vector<1x96xf32>
    %c0_6 = arith.constant 0 : index
    %c0_7 = arith.constant 0 : index
    %6 = vector.load %arg6[%c0_6, %c0_7] : memref<1x96xf32, #tpu.memory_space<vmem>>, vector<1x96xf32>
    %c0_8 = arith.constant 0 : index
    %c0_9 = arith.constant 0 : index
    %c0_10 = arith.constant 0 : index
    %7 = vector.load %arg1[%c0_8, %c0_9, %c0_10] : memref<4x8x32xf32, #tpu.memory_space<vmem>>, vector<4x8x32xf32>
    %cst = arith.constant 0.000000e+00 : f32
    %8 = vector.broadcast %cst : f32 to vector<4x8x32xf32>
    %9 = arith.maximumf %7, %8 : vector<4x8x32xf32>
    %10 = vector.shape_cast %9 : vector<4x8x32xf32> to vector<32x32xf32>
    %11 = arith.truncf %10 : vector<32x32xf32> to vector<32x32xbf16>
    %cst_11 = arith.constant dense<0.000000e+00> : vector<32x96xf32>
    %12 = tpu.matmul %11, %3, %cst_11 {dimension_numbers = #tpu.dot_dimension_numbers<[1], [0], [0], [1], [0, 0, 1, 1], [], []>} : vector<32x32xbf16>, vector<32x96xbf16>, vector<32x96xf32> -> vector<32x96xf32>
    %13 = vector.broadcast %5 : vector<1x96xf32> to vector<32x96xf32>
    %14 = arith.addf %12, %13 : vector<32x96xf32>
    %15 = vector.shape_cast %14 : vector<32x96xf32> to vector<4x8x96xf32>
    %c0_12 = arith.constant 0 : index
    %c0_13 = arith.constant 0 : index
    %16 = vector.load %arg8[%c0_12, %c0_13] : memref<8x32xf32, #tpu.memory_space<vmem>>, vector<8x32xf32>
    %17 = arith.truncf %16 : vector<8x32xf32> to vector<8x32xbf16>
    %cst_14 = arith.constant dense<0.000000e+00> : vector<8x96xf32>
    %18 = tpu.matmul %17, %4, %cst_14 {dimension_numbers = #tpu.dot_dimension_numbers<[1], [0], [0], [1], [0, 0, 1, 1], [], []>} : vector<8x32xbf16>, vector<32x96xbf16>, vector<8x96xf32> -> vector<8x96xf32>
    %19 = vector.broadcast %6 : vector<1x96xf32> to vector<8x96xf32>
    %20 = arith.addf %18, %19 : vector<8x96xf32>
    %21 = vector.extract_strided_slice %15 {offsets = [0, 0, 0], sizes = [1, 8, 96], strides = [1, 1, 1]} : vector<4x8x96xf32> to vector<1x8x96xf32>
    %22 = vector.shape_cast %21 : vector<1x8x96xf32> to vector<8x96xf32>
    %23 = vector.extract_strided_slice %22 {offsets = [0, 0], sizes = [8, 32], strides = [1, 1]} : vector<8x96xf32> to vector<8x32xf32>
    %24 = vector.extract_strided_slice %20 {offsets = [0, 0], sizes = [8, 32], strides = [1, 1]} : vector<8x96xf32> to vector<8x32xf32>
    %25 = arith.addf %23, %24 : vector<8x32xf32>
    %26 = arith.negf %25 : vector<8x32xf32>
    %27 = math.exp %26 : vector<8x32xf32>
    %cst_15 = arith.constant 1.000000e+00 : f32
    %28 = vector.broadcast %cst_15 : f32 to vector<8x32xf32>
    %29 = arith.addf %28, %27 : vector<8x32xf32>
    %30 = arith.divf %28, %29 : vector<8x32xf32>
    %31 = vector.extract_strided_slice %22 {offsets = [0, 32], sizes = [8, 32], strides = [1, 1]} : vector<8x96xf32> to vector<8x32xf32>
    %32 = vector.extract_strided_slice %20 {offsets = [0, 32], sizes = [8, 32], strides = [1, 1]} : vector<8x96xf32> to vector<8x32xf32>
    %33 = arith.addf %31, %32 : vector<8x32xf32>
    %34 = arith.negf %33 : vector<8x32xf32>
    %35 = math.exp %34 : vector<8x32xf32>
    %cst_16 = arith.constant 1.000000e+00 : f32
    %36 = vector.broadcast %cst_16 : f32 to vector<8x32xf32>
    %37 = arith.addf %36, %35 : vector<8x32xf32>
    %38 = arith.divf %36, %37 : vector<8x32xf32>
    %39 = vector.extract_strided_slice %22 {offsets = [0, 64], sizes = [8, 32], strides = [1, 1]} : vector<8x96xf32> to vector<8x32xf32>
    %40 = vector.extract_strided_slice %20 {offsets = [0, 64], sizes = [8, 32], strides = [1, 1]} : vector<8x96xf32> to vector<8x32xf32>
    %41 = arith.mulf %30, %40 : vector<8x32xf32>
    %42 = arith.addf %39, %41 : vector<8x32xf32>
    %43 = math.tanh %42 : vector<8x32xf32>
    %cst_17 = arith.constant 1.000000e+00 : f32
    %44 = vector.broadcast %cst_17 : f32 to vector<8x32xf32>
    %45 = arith.subf %44, %38 : vector<8x32xf32>
    %46 = arith.mulf %45, %43 : vector<8x32xf32>
    %47 = arith.mulf %38, %16 : vector<8x32xf32>
    %48 = arith.addf %46, %47 : vector<8x32xf32>
    %c0_18 = arith.constant 0 : index
    %c0_19 = arith.constant 0 : index
    %c0_20 = arith.constant 0 : index
    %49 = vector.load %arg7[%c0_18, %c0_19, %c0_20] : memref<4x8x32xf32, #tpu.memory_space<vmem>>, vector<1x8x32xf32>
    %50 = vector.shape_cast %49 : vector<1x8x32xf32> to vector<8x32xf32>
    %51 = vector.shape_cast %48 : vector<8x32xf32> to vector<1x8x32xf32>
    tpu.vector_store %arg7[%c0_18, %c0_19, %c0_20], %51 {strides = array<i32>} : memref<4x8x32xf32, #tpu.memory_space<vmem>>, vector<1x8x32xf32>,
    %52 = arith.truncf %48 : vector<8x32xf32> to vector<8x32xbf16>
    %cst_21 = arith.constant dense<0.000000e+00> : vector<8x96xf32>
    %53 = tpu.matmul %52, %4, %cst_21 {dimension_numbers = #tpu.dot_dimension_numbers<[1], [0], [0], [1], [0, 0, 1, 1], [], []>} : vector<8x32xbf16>, vector<32x96xbf16>, vector<8x96xf32> -> vector<8x96xf32>
    %54 = vector.broadcast %6 : vector<1x96xf32> to vector<8x96xf32>
    %55 = arith.addf %53, %54 : vector<8x96xf32>
    %56 = vector.extract_strided_slice %15 {offsets = [1, 0, 0], sizes = [1, 8, 96], strides = [1, 1, 1]} : vector<4x8x96xf32> to vector<1x8x96xf32>
    %57 = vector.shape_cast %56 : vector<1x8x96xf32> to vector<8x96xf32>
    %58 = vector.extract_strided_slice %57 {offsets = [0, 0], sizes = [8, 32], strides = [1, 1]} : vector<8x96xf32> to vector<8x32xf32>
    %59 = vector.extract_strided_slice %55 {offsets = [0, 0], sizes = [8, 32], strides = [1, 1]} : vector<8x96xf32> to vector<8x32xf32>
    %60 = arith.addf %58, %59 : vector<8x32xf32>
    %61 = arith.negf %60 : vector<8x32xf32>
    %62 = math.exp %61 : vector<8x32xf32>
    %cst_22 = arith.constant 1.000000e+00 : f32
    %63 = vector.broadcast %cst_22 : f32 to vector<8x32xf32>
    %64 = arith.addf %63, %62 : vector<8x32xf32>
    %65 = arith.divf %63, %64 : vector<8x32xf32>
    %66 = vector.extract_strided_slice %57 {offsets = [0, 32], sizes = [8, 32], strides = [1, 1]} : vector<8x96xf32> to vector<8x32xf32>
    %67 = vector.extract_strided_slice %55 {offsets = [0, 32], sizes = [8, 32], strides = [1, 1]} : vector<8x96xf32> to vector<8x32xf32>
    %68 = arith.addf %66, %67 : vector<8x32xf32>
    %69 = arith.negf %68 : vector<8x32xf32>
    %70 = math.exp %69 : vector<8x32xf32>
    %cst_23 = arith.constant 1.000000e+00 : f32
    %71 = vector.broadcast %cst_23 : f32 to vector<8x32xf32>
    %72 = arith.addf %71, %70 : vector<8x32xf32>
    %73 = arith.divf %71, %72 : vector<8x32xf32>
    %74 = vector.extract_strided_slice %57 {offsets = [0, 64], sizes = [8, 32], strides = [1, 1]} : vector<8x96xf32> to vector<8x32xf32>
    %75 = vector.extract_strided_slice %55 {offsets = [0, 64], sizes = [8, 32], strides = [1, 1]} : vector<8x96xf32> to vector<8x32xf32>
    %76 = arith.mulf %65, %75 : vector<8x32xf32>
    %77 = arith.addf %74, %76 : vector<8x32xf32>
    %78 = math.tanh %77 : vector<8x32xf32>
    %cst_24 = arith.constant 1.000000e+00 : f32
    %79 = vector.broadcast %cst_24 : f32 to vector<8x32xf32>
    %80 = arith.subf %79, %73 : vector<8x32xf32>
    %81 = arith.mulf %80, %78 : vector<8x32xf32>
    %82 = arith.mulf %73, %48 : vector<8x32xf32>
    %83 = arith.addf %81, %82 : vector<8x32xf32>
    %c1 = arith.constant 1 : index
    %c0_25 = arith.constant 0 : index
    %c0_26 = arith.constant 0 : index
    %84 = vector.load %arg7[%c1, %c0_25, %c0_26] : memref<4x8x32xf32, #tpu.memory_space<vmem>>, vector<1x8x32xf32>
    %85 = vector.shape_cast %84 : vector<1x8x32xf32> to vector<8x32xf32>
    %86 = vector.shape_cast %83 : vector<8x32xf32> to vector<1x8x32xf32>
    tpu.vector_store %arg7[%c1, %c0_25, %c0_26], %86 {strides = array<i32>} : memref<4x8x32xf32, #tpu.memory_space<vmem>>, vector<1x8x32xf32>,
    %87 = arith.truncf %83 : vector<8x32xf32> to vector<8x32xbf16>
    %cst_27 = arith.constant dense<0.000000e+00> : vector<8x96xf32>
    %88 = tpu.matmul %87, %4, %cst_27 {dimension_numbers = #tpu.dot_dimension_numbers<[1], [0], [0], [1], [0, 0, 1, 1], [], []>} : vector<8x32xbf16>, vector<32x96xbf16>, vector<8x96xf32> -> vector<8x96xf32>
    %89 = vector.broadcast %6 : vector<1x96xf32> to vector<8x96xf32>
    %90 = arith.addf %88, %89 : vector<8x96xf32>
    %91 = vector.extract_strided_slice %15 {offsets = [2, 0, 0], sizes = [1, 8, 96], strides = [1, 1, 1]} : vector<4x8x96xf32> to vector<1x8x96xf32>
    %92 = vector.shape_cast %91 : vector<1x8x96xf32> to vector<8x96xf32>
    %93 = vector.extract_strided_slice %92 {offsets = [0, 0], sizes = [8, 32], strides = [1, 1]} : vector<8x96xf32> to vector<8x32xf32>
    %94 = vector.extract_strided_slice %90 {offsets = [0, 0], sizes = [8, 32], strides = [1, 1]} : vector<8x96xf32> to vector<8x32xf32>
    %95 = arith.addf %93, %94 : vector<8x32xf32>
    %96 = arith.negf %95 : vector<8x32xf32>
    %97 = math.exp %96 : vector<8x32xf32>
    %cst_28 = arith.constant 1.000000e+00 : f32
    %98 = vector.broadcast %cst_28 : f32 to vector<8x32xf32>
    %99 = arith.addf %98, %97 : vector<8x32xf32>
    %100 = arith.divf %98, %99 : vector<8x32xf32>
    %101 = vector.extract_strided_slice %92 {offsets = [0, 32], sizes = [8, 32], strides = [1, 1]} : vector<8x96xf32> to vector<8x32xf32>
    %102 = vector.extract_strided_slice %90 {offsets = [0, 32], sizes = [8, 32], strides = [1, 1]} : vector<8x96xf32> to vector<8x32xf32>
    %103 = arith.addf %101, %102 : vector<8x32xf32>
    %104 = arith.negf %103 : vector<8x32xf32>
    %105 = math.exp %104 : vector<8x32xf32>
    %cst_29 = arith.constant 1.000000e+00 : f32
    %106 = vector.broadcast %cst_29 : f32 to vector<8x32xf32>
    %107 = arith.addf %106, %105 : vector<8x32xf32>
    %108 = arith.divf %106, %107 : vector<8x32xf32>
    %109 = vector.extract_strided_slice %92 {offsets = [0, 64], sizes = [8, 32], strides = [1, 1]} : vector<8x96xf32> to vector<8x32xf32>
    %110 = vector.extract_strided_slice %90 {offsets = [0, 64], sizes = [8, 32], strides = [1, 1]} : vector<8x96xf32> to vector<8x32xf32>
    %111 = arith.mulf %100, %110 : vector<8x32xf32>
    %112 = arith.addf %109, %111 : vector<8x32xf32>
    %113 = math.tanh %112 : vector<8x32xf32>
    %cst_30 = arith.constant 1.000000e+00 : f32
    %114 = vector.broadcast %cst_30 : f32 to vector<8x32xf32>
    %115 = arith.subf %114, %108 : vector<8x32xf32>
    %116 = arith.mulf %115, %113 : vector<8x32xf32>
    %117 = arith.mulf %108, %83 : vector<8x32xf32>
    %118 = arith.addf %116, %117 : vector<8x32xf32>
    %c2 = arith.constant 2 : index
    %c0_31 = arith.constant 0 : index
    %c0_32 = arith.constant 0 : index
    %119 = vector.load %arg7[%c2, %c0_31, %c0_32] : memref<4x8x32xf32, #tpu.memory_space<vmem>>, vector<1x8x32xf32>
    %120 = vector.shape_cast %119 : vector<1x8x32xf32> to vector<8x32xf32>
    %121 = vector.shape_cast %118 : vector<8x32xf32> to vector<1x8x32xf32>
    tpu.vector_store %arg7[%c2, %c0_31, %c0_32], %121 {strides = array<i32>} : memref<4x8x32xf32, #tpu.memory_space<vmem>>, vector<1x8x32xf32>,
    %122 = arith.truncf %118 : vector<8x32xf32> to vector<8x32xbf16>
    %cst_33 = arith.constant dense<0.000000e+00> : vector<8x96xf32>
    %123 = tpu.matmul %122, %4, %cst_33 {dimension_numbers = #tpu.dot_dimension_numbers<[1], [0], [0], [1], [0, 0, 1, 1], [], []>} : vector<8x32xbf16>, vector<32x96xbf16>, vector<8x96xf32> -> vector<8x96xf32>
    %124 = vector.broadcast %6 : vector<1x96xf32> to vector<8x96xf32>
    %125 = arith.addf %123, %124 : vector<8x96xf32>
    %126 = vector.extract_strided_slice %15 {offsets = [3, 0, 0], sizes = [1, 8, 96], strides = [1, 1, 1]} : vector<4x8x96xf32> to vector<1x8x96xf32>
    %127 = vector.shape_cast %126 : vector<1x8x96xf32> to vector<8x96xf32>
    %128 = vector.extract_strided_slice %127 {offsets = [0, 0], sizes = [8, 32], strides = [1, 1]} : vector<8x96xf32> to vector<8x32xf32>
    %129 = vector.extract_strided_slice %125 {offsets = [0, 0], sizes = [8, 32], strides = [1, 1]} : vector<8x96xf32> to vector<8x32xf32>
    %130 = arith.addf %128, %129 : vector<8x32xf32>
    %131 = arith.negf %130 : vector<8x32xf32>
    %132 = math.exp %131 : vector<8x32xf32>
    %cst_34 = arith.constant 1.000000e+00 : f32
    %133 = vector.broadcast %cst_34 : f32 to vector<8x32xf32>
    %134 = arith.addf %133, %132 : vector<8x32xf32>
    %135 = arith.divf %133, %134 : vector<8x32xf32>
    %136 = vector.extract_strided_slice %127 {offsets = [0, 32], sizes = [8, 32], strides = [1, 1]} : vector<8x96xf32> to vector<8x32xf32>
    %137 = vector.extract_strided_slice %125 {offsets = [0, 32], sizes = [8, 32], strides = [1, 1]} : vector<8x96xf32> to vector<8x32xf32>
    %138 = arith.addf %136, %137 : vector<8x32xf32>
    %139 = arith.negf %138 : vector<8x32xf32>
    %140 = math.exp %139 : vector<8x32xf32>
    %cst_35 = arith.constant 1.000000e+00 : f32
    %141 = vector.broadcast %cst_35 : f32 to vector<8x32xf32>
    %142 = arith.addf %141, %140 : vector<8x32xf32>
    %143 = arith.divf %141, %142 : vector<8x32xf32>
    %144 = vector.extract_strided_slice %127 {offsets = [0, 64], sizes = [8, 32], strides = [1, 1]} : vector<8x96xf32> to vector<8x32xf32>
    %145 = vector.extract_strided_slice %125 {offsets = [0, 64], sizes = [8, 32], strides = [1, 1]} : vector<8x96xf32> to vector<8x32xf32>
    %146 = arith.mulf %135, %145 : vector<8x32xf32>
    %147 = arith.addf %144, %146 : vector<8x32xf32>
    %148 = math.tanh %147 : vector<8x32xf32>
    %cst_36 = arith.constant 1.000000e+00 : f32
    %149 = vector.broadcast %cst_36 : f32 to vector<8x32xf32>
    %150 = arith.subf %149, %143 : vector<8x32xf32>
    %151 = arith.mulf %150, %148 : vector<8x32xf32>
    %152 = arith.mulf %143, %118 : vector<8x32xf32>
    %153 = arith.addf %151, %152 : vector<8x32xf32>
    %c3 = arith.constant 3 : index
    %c0_37 = arith.constant 0 : index
    %c0_38 = arith.constant 0 : index
    %154 = vector.load %arg7[%c3, %c0_37, %c0_38] : memref<4x8x32xf32, #tpu.memory_space<vmem>>, vector<1x8x32xf32>
    %155 = vector.shape_cast %154 : vector<1x8x32xf32> to vector<8x32xf32>
    %156 = vector.shape_cast %153 : vector<8x32xf32> to vector<1x8x32xf32>
    tpu.vector_store %arg7[%c3, %c0_37, %c0_38], %156 {strides = array<i32>} : memref<4x8x32xf32, #tpu.memory_space<vmem>>, vector<1x8x32xf32>,
    %c0_39 = arith.constant 0 : index
    %c0_40 = arith.constant 0 : index
    %157 = vector.load %arg8[%c0_39, %c0_40] : memref<8x32xf32, #tpu.memory_space<vmem>>, vector<8x32xf32>
    tpu.vector_store %arg8[%c0_39, %c0_40], %153 {strides = array<i32>} : memref<8x32xf32, #tpu.memory_space<vmem>>, vector<8x32xf32>,
    return
  }
  func.func @transform_0(%arg0: i32) -> (i32, i32, i32) {
    %c0_i32 = arith.constant 0 : i32
    %c0_i32_0 = arith.constant 0 : i32
    %c0_i32_1 = arith.constant 0 : i32
    return %arg0, %c0_i32, %c0_i32_0 : i32, i32, i32
  }
  func.func @transform_1(%arg0: i32) -> (i32, i32) {
    %c0_i32 = arith.constant 0 : i32
    %c0_i32_0 = arith.constant 0 : i32
    %c0_i32_1 = arith.constant 0 : i32
    return %c0_i32, %c0_i32_0 : i32, i32
  }
  func.func @transform_2(%arg0: i32) -> (i32, i32) {
    %c0_i32 = arith.constant 0 : i32
    %c0_i32_0 = arith.constant 0 : i32
    %c0_i32_1 = arith.constant 0 : i32
    return %c0_i32, %c0_i32_0 : i32, i32
  }
  func.func @transform_3(%arg0: i32) -> (i32, i32) {
    %c0_i32 = arith.constant 0 : i32
    %c0_i32_0 = arith.constant 0 : i32
    %c0_i32_1 = arith.constant 0 : i32
    return %c0_i32, %c0_i32_0 : i32, i32
  }
  func.func @transform_4(%arg0: i32) -> (i32, i32) {
    %c0_i32 = arith.constant 0 : i32
    %c0_i32_0 = arith.constant 0 : i32
    %c0_i32_1 = arith.constant 0 : i32
    return %c0_i32, %c0_i32_0 : i32, i32
  }
  func.func @transform_5(%arg0: i32) -> (i32, i32) {
    %c0_i32 = arith.constant 0 : i32
    %c0_i32_0 = arith.constant 0 : i32
    %c0_i32_1 = arith.constant 0 : i32
    return %c0_i32, %c0_i32_0 : i32, i32
  }
  func.func @transform_6(%arg0: i32) -> (i32, i32, i32) {
    %c0_i32 = arith.constant 0 : i32
    %c0_i32_0 = arith.constant 0 : i32
    %c0_i32_1 = arith.constant 0 : i32
    return %arg0, %c0_i32, %c0_i32_0 : i32, i32, i32
  }
  func.func @transform_7(%arg0: i32) -> (i32, i32) {
    %c0_i32 = arith.constant 0 : i32
    %c0_i32_0 = arith.constant 0 : i32
    %c0_i32_1 = arith.constant 0 : i32
    return %c0_i32, %c0_i32_0 : i32, i32
  }
}

</mosaic_0001>

<llo_original>
// kernel: tpu_custom_call.1
$region0: #{tpu_custom_call.1}
  #allocation0 [shape = 'u32[]', space=smem, size = 0x4, offset = 0x4, fixed_abs, tag = 'smem constant byte address 0x4 - core index']
  #allocation1 [shape = 'u32[144,128]{1,0:T(1,128)}', space=vmem, size = 0x12000, scoped, tag = 'internal scratch']
  %s0 = inlined_call_operand.hbm [shape: f32[8,8,32], index: 0, kind: input, shape index: {}]
  %s1 = inlined_call_operand.hbm [shape: f32[8,32], index: 1, kind: input, shape index: {}]
  %s2 = inlined_call_operand.hbm [shape: bf16[32,96], index: 2, kind: input, shape index: {}]
  %s3 = inlined_call_operand.hbm [shape: bf16[32,96], index: 3, kind: input, shape index: {}]
  %s4 = inlined_call_operand.vmem [shape: f32[1,96], index: 4, kind: input, shape index: {}]
  %s5 = inlined_call_operand.vmem [shape: f32[1,96], index: 5, kind: input, shape index: {}]
  %s6 = inlined_call_operand.hbm [shape: f32[8,8,32], index: 6, kind: output, shape index: {0}]
  %s7 = inlined_call_operand.hbm [shape: f32[8,32], index: 7, kind: output, shape index: {1}]
  %8 = xla_tuple %s6, %s7
  %s9 = sld [smem:[#allocation0]]
  $region85: #{tpu_custom_call.1} parent=0
    _
  %s11 = ssub.s32 1, %s9
  %s12 = scalar_select 0, %s11, %s9
  $region1: #{tpu_custom_call.1} parent=0
    #allocation2 [shape = 'u8[32768]{0}', space=vmem, size = 0x8000, scoped, tag = 'input window, operand 0']
    #allocation3 [shape = 's32[2]{0}', space=sflag, size = 0x8, scoped, tag = 'scoped memory for tpu_custom_call.1']
    #allocation4 [shape = 's32[2]{0}', space=sflag, size = 0x8, scoped, tag = 'scoped memory for tpu_custom_call.1']
    #allocation5 [shape = 'u8[4096]{0}', space=vmem, size = 0x1000, scoped, tag = 'input window, operand 1, single buffered']
    #allocation6 [shape = 's32[1]{0}', space=sflag, size = 0x4, scoped, tag = 'scoped memory for tpu_custom_call.1']
    #allocation7 [shape = 'u8[8192]{0}', space=vmem, size = 0x2000, scoped, tag = 'input window, operand 2, single buffered']
    #allocation8 [shape = 'u8[8192]{0}', space=vmem, size = 0x2000, scoped, tag = 'input window, operand 3, single buffered']
    #allocation9 [shape = 's32[1]{0}', space=sflag, size = 0x4, scoped, tag = 'scoped memory for tpu_custom_call.1']
    #allocation10 [shape = 'u8[32768]{0}', space=vmem, size = 0x8000, scoped, tag = 'output window, operand 0']
    #allocation11 [shape = 'u8[4096]{0}', space=vmem, size = 0x1000, scoped, tag = 'output window, operand 1, single buffered']
    #allocation12 [shape = 's32[1]{0}', space=sflag, size = 0x4, scoped, tag = 'scoped memory for tpu_custom_call.1']
    %13 = vsyncpa [#allocation3], 0
    %s14 = scalar_lea.sflag [#allocation3], 1
    %15 = vsyncpa %s14, 0
    %16 = vsyncpa [#allocation6], 0
    %17 = vsyncpa [#allocation9], 0
    %18 = vsyncpa [#allocation4], 0
    %s19 = scalar_lea.sflag [#allocation4], 1
    %20 = vsyncpa %s19, 0
    %21 = vsyncpa [#allocation12], 0
    loop: start=0, step=1, limit=4
    $region2: #{tpu_custom_call.1} parent=1 // loop_pre_header
      _
    $region3: #{tpu_custom_call.1} parent=1 // loop_header
      %s23 = sphi 0, %s27
      %p24 = scmp.ge.s32.totalorder %s23, 4
      %s33 = sphi 0, %s35
      %s36 = sphi 0, %s33
      %s37 = sphi 0, %s36
      %s53 = sphi 0, %s37
      %s57 = sphi 0, %s57
      %s59 = sphi 0, %s57
      %s60 = sphi 0, %s59
      %s74 = sphi 0, %s60
      %s78 = sphi 0, %s78
      %s80 = sphi 0, %s78
      %s81 = sphi 0, %s80
      %s95 = sphi 0, %s81
      %s99 = sphi 0, %s99
      %s101 = sphi 0, %s99
      %s102 = sphi 0, %s101
      %s116 = sphi 0, %s102
      %s120 = sphi 0, %s120
      %s122 = sphi 0, %s120
      %s123 = sphi 0, %s122
      %s137 = sphi 0, %s123
      %s141 = sphi 0, %s141
      %s143 = sphi 0, %s141
      %s144 = sphi 0, %s143
      %s158 = sphi 0, %s144
      %s164 = sphi 0, %s166
      %s167 = sphi 0, %s164
      %s168 = sphi 0, %s167
      %s184 = sphi 0, %s168
      %s188 = sphi 0, %s188
      %s190 = sphi 0, %s188
      %s191 = sphi 0, %s190
      %s205 = sphi 0, %s191
    $region4: #{tpu_custom_call.1} parent=1 // loop_header_branch
      %26 = sbr.rel (%p24) target = $region8
    $region5: #{tpu_custom_call.1} parent=1 // loop_body
      %s28 = ssub.s32 %s23, 1
      %s29 = ssub.s32 %s23, 2
      %s30 = sadd.s32 %s23, 1
      %s31 = ssub.s32 %s23, %s30
      %p32 = scmp.eq.s32.totalorder %s31, 0
      %s34 = sadd.s32 %s33, 1
      %s35 = scalar_select %p32, %s33, %s34
      %p38 = pneg %p32
      %p39 = scmp.eq.s32.totalorder %s23, 1
      %p40 = por %p38, %p39
      %p41 = scmp.ne.s32.totalorder %s33, %s36
      %p42 = scmp.eq.s32.totalorder %s23, 0
      %p43 = por %p41, %p42
      %p44 = scmp.ne.s32.totalorder %s33, %s36
      %p45 = scmp.eq.s32.totalorder %s28, 1
      %p46 = por %p44, %p45
      %p47 = scmp.ne.s32.totalorder %s36, %s37
      %p48 = scmp.eq.s32.totalorder %s28, 0
      %p49 = por %p47, %p48
      %p50 = scmp.ne.s32.totalorder %s36, %s37
      %p51 = scmp.eq.s32.totalorder %s29, 1
      %p52 = por %p50, %p51
      %p54 = scmp.ne.s32.totalorder %s37, %s53
      %p55 = scmp.eq.s32.totalorder %s29, 0
      %p56 = por %p54, %p55
      %s58 = sadd.s32 %s57, 1
      %p61 = scmp.eq.s32.totalorder %s23, 1
      %p62 = scmp.ne.s32.totalorder %s57, %s59
      %p63 = scmp.eq.s32.totalorder %s23, 0
      %p64 = por %p62, %p63
      %p65 = scmp.ne.s32.totalorder %s57, %s59
      %p66 = scmp.eq.s32.totalorder %s28, 1
      %p67 = por %p65, %p66
      %p68 = scmp.ne.s32.totalorder %s59, %s60
      %p69 = scmp.eq.s32.totalorder %s28, 0
      %p70 = por %p68, %p69
      %p71 = scmp.ne.s32.totalorder %s59, %s60
      %p72 = scmp.eq.s32.totalorder %s29, 1
      %p73 = por %p71, %p72
      %p75 = scmp.ne.s32.totalorder %s60, %s74
      %p76 = scmp.eq.s32.totalorder %s29, 0
      %p77 = por %p75, %p76
      %s79 = sadd.s32 %s78, 1
      %p82 = scmp.eq.s32.totalorder %s23, 1
      %p83 = scmp.ne.s32.totalorder %s78, %s80
      %p84 = scmp.eq.s32.totalorder %s23, 0
      %p85 = por %p83, %p84
      %p86 = scmp.ne.s32.totalorder %s78, %s80
      %p87 = scmp.eq.s32.totalorder %s28, 1
      %p88 = por %p86, %p87
      %p89 = scmp.ne.s32.totalorder %s80, %s81
      %p90 = scmp.eq.s32.totalorder %s28, 0
      %p91 = por %p89, %p90
      %p92 = scmp.ne.s32.totalorder %s80, %s81
      %p93 = scmp.eq.s32.totalorder %s29, 1
      %p94 = por %p92, %p93
      %p96 = scmp.ne.s32.totalorder %s81, %s95
      %p97 = scmp.eq.s32.totalorder %s29, 0
      %p98 = por %p96, %p97
      %s100 = sadd.s32 %s99, 1
      %p103 = scmp.eq.s32.totalorder %s23, 1
      %p104 = scmp.ne.s32.totalorder %s99, %s101
      %p105 = scmp.eq.s32.totalorder %s23, 0
      %p106 = por %p104, %p105
      %p107 = scmp.ne.s32.totalorder %s99, %s101
      %p108 = scmp.eq.s32.totalorder %s28, 1
      %p109 = por %p107, %p108
      %p110 = scmp.ne.s32.totalorder %s101, %s102
      %p111 = scmp.eq.s32.totalorder %s28, 0
      %p112 = por %p110, %p111
      %p113 = scmp.ne.s32.totalorder %s101, %s102
      %p114 = scmp.eq.s32.totalorder %s29, 1
      %p115 = por %p113, %p114
      %p117 = scmp.ne.s32.totalorder %s102, %s116
      %p118 = scmp.eq.s32.totalorder %s29, 0
      %p119 = por %p117, %p118
      %s121 = sadd.s32 %s120, 1
      %p124 = scmp.eq.s32.totalorder %s23, 1
      %p125 = scmp.ne.s32.totalorder %s120, %s122
      %p126 = scmp.eq.s32.totalorder %s23, 0
      %p127 = por %p125, %p126
      %p128 = scmp.ne.s32.totalorder %s120, %s122
      %p129 = scmp.eq.s32.totalorder %s28, 1
      %p130 = por %p128, %p129
      %p131 = scmp.ne.s32.totalorder %s122, %s123
      %p132 = scmp.eq.s32.totalorder %s28, 0
      %p133 = por %p131, %p132
      %p134 = scmp.ne.s32.totalorder %s122, %s123
      %p135 = scmp.eq.s32.totalorder %s29, 1
      %p136 = por %p134, %p135
      %p138 = scmp.ne.s32.totalorder %s123, %s137
      %p139 = scmp.eq.s32.totalorder %s29, 0
      %p140 = por %p138, %p139
      %s142 = sadd.s32 %s141, 1
      %p145 = scmp.eq.s32.totalorder %s23, 1
      %p146 = scmp.ne.s32.totalorder %s141, %s143
      %p147 = scmp.eq.s32.totalorder %s23, 0
      %p148 = por %p146, %p147
      %p149 = scmp.ne.s32.totalorder %s141, %s143
      %p150 = scmp.eq.s32.totalorder %s28, 1
      %p151 = por %p149, %p150
      %p152 = scmp.ne.s32.totalorder %s143, %s144
      %p153 = scmp.eq.s32.totalorder %s28, 0
      %p154 = por %p152, %p153
      %p155 = scmp.ne.s32.totalorder %s143, %s144
      %p156 = scmp.eq.s32.totalorder %s29, 1
      %p157 = por %p155, %p156
      %p159 = scmp.ne.s32.totalorder %s144, %s158
      %p160 = scmp.eq.s32.totalorder %s29, 0
      %p161 = por %p159, %p160
      %s162 = ssub.s32 %s23, %s30
      %p163 = scmp.eq.s32.totalorder %s162, 0
      %s165 = sadd.s32 %s164, 1
      %s166 = scalar_select %p163, %s164, %s165
      %p169 = pneg %p163
      %p170 = scmp.eq.s32.totalorder %s23, 1
      %p171 = por %p169, %p170
      %p172 = scmp.ne.s32.totalorder %s164, %s167
      %p173 = scmp.eq.s32.totalorder %s23, 0
      %p174 = por %p172, %p173
      %p175 = scmp.ne.s32.totalorder %s164, %s167
      %p176 = scmp.eq.s32.totalorder %s28, 1
      %p177 = por %p175, %p176
      %p178 = scmp.ne.s32.totalorder %s167, %s168
      %p179 = scmp.eq.s32.totalorder %s28, 0
      %p180 = por %p178, %p179
      %p181 = scmp.ne.s32.totalorder %s167, %s168
      %p182 = scmp.eq.s32.totalorder %s29, 1
      %p183 = por %p181, %p182
      %p185 = scmp.ne.s32.totalorder %s168, %s184
      %p186 = scmp.eq.s32.totalorder %s29, 0
      %p187 = por %p185, %p186
      %s189 = sadd.s32 %s188, 1
      %p192 = scmp.eq.s32.totalorder %s23, 1
      %p193 = scmp.ne.s32.totalorder %s188, %s190
      %p194 = scmp.eq.s32.totalorder %s23, 0
      %p195 = por %p193, %p194
      %p196 = scmp.ne.s32.totalorder %s188, %s190
      %p197 = scmp.eq.s32.totalorder %s28, 1
      %p198 = por %p196, %p197
      %p199 = scmp.ne.s32.totalorder %s190, %s191
      %p200 = scmp.eq.s32.totalorder %s28, 0
      %p201 = por %p199, %p200
      %p202 = scmp.ne.s32.totalorder %s190, %s191
      %p203 = scmp.eq.s32.totalorder %s29, 1
      %p204 = por %p202, %p203
      %p206 = scmp.ne.s32.totalorder %s191, %s205
      %p207 = scmp.eq.s32.totalorder %s29, 0
      %p208 = por %p206, %p207
      %p209 = scmp.le.s32.totalorder 1, %s23
      %p210 = scmp.lt.s32.totalorder %s23, 3
      %p211 = pnand %p209, %p210
      %p212 = pneg %p211
      // Predicated region
      $region9: #{tpu_custom_call.1} parent=5 // pred_check
        _
      $region10: #{tpu_custom_call.1} parent=5 // pred_check_branch
        %214 = sbr.rel (%p211) target = $region12
      $region11: #{tpu_custom_call.1} parent=5 // pred_region
        %s215 = ssub.s32 %s23, 1
        // Predicated region
        $region13: #{tpu_custom_call.1} parent=11 // pred_check
          %p216 = pneg %p70
        $region14: #{tpu_custom_call.1} parent=11 // pred_check_branch
          %218 = sbr.rel (%p216) target = $region16
        $region15: #{tpu_custom_call.1} parent=11 // pred_region
          %s220 = ssub.s32 128, 128
          %221 = vsyncadd [#allocation6], %s220
          %s223 = sshll.u32 [#allocation5], 4
          %s224 = int_to_ptr.vmem [resolvable:$true] %s223
          %226 = dma.hbm_to_vmem [thread:$0]  %s1, 128, %s224, [#allocation6]
        $region16: #{tpu_custom_call.1} parent=11 // pred_fallthru
          _
        // Predicated region
        $region17: #{tpu_custom_call.1} parent=11 // pred_check
          %p227 = pneg %p91
        $region18: #{tpu_custom_call.1} parent=11 // pred_check_branch
          %229 = sbr.rel (%p227) target = $region20
        $region19: #{tpu_custom_call.1} parent=11 // pred_region
          %s231 = ssub.s32 256, 256
          %232 = vsyncadd [#allocation6], %s231
          %s233 = sshll.u32 [#allocation7], 4
          %s234 = int_to_ptr.vmem [resolvable:$true] %s233
          %239 = dma.hbm_to_vmem [thread:$0]  %s2, 256, %s234, [#allocation6], 64, 64, 4
        $region20: #{tpu_custom_call.1} parent=11 // pred_fallthru
          _
        // Predicated region
        $region21: #{tpu_custom_call.1} parent=11 // pred_check
          %p240 = pneg %p112
        $region22: #{tpu_custom_call.1} parent=11 // pred_check_branch
          %242 = sbr.rel (%p240) target = $region24
        $region23: #{tpu_custom_call.1} parent=11 // pred_region
          %s244 = ssub.s32 256, 256
          %245 = vsyncadd [#allocation9], %s244
          %s246 = sshll.u32 [#allocation8], 4
          %s247 = int_to_ptr.vmem [resolvable:$true] %s246
          %252 = dma.hbm_to_vmem [thread:$0]  %s3, 256, %s247, [#allocation9], 64, 64, 4
        $region24: #{tpu_custom_call.1} parent=11 // pred_fallthru
          _
        // Predicated region
        $region25: #{tpu_custom_call.1} parent=11 // pred_check
          %p253 = pneg %p133
        $region26: #{tpu_custom_call.1} parent=11 // pred_check_branch
          %255 = sbr.rel (%p253) target = $region28
        $region27: #{tpu_custom_call.1} parent=11 // pred_region
          _
        $region28: #{tpu_custom_call.1} parent=11 // pred_fallthru
          _
        // Predicated region
        $region29: #{tpu_custom_call.1} parent=11 // pred_check
          %p256 = pneg %p154
        $region30: #{tpu_custom_call.1} parent=11 // pred_check_branch
          %258 = sbr.rel (%p256) target = $region32
        $region31: #{tpu_custom_call.1} parent=11 // pred_region
          _
        $region32: #{tpu_custom_call.1} parent=11 // pred_fallthru
          _
      $region12: #{tpu_custom_call.1} parent=5 // pred_fallthru
        _
      %p259 = scmp.lt.s32.totalorder %s23, 2
      // Predicated region
      $region33: #{tpu_custom_call.1} parent=5 // pred_check
        %p260 = pneg %p259
      $region34: #{tpu_custom_call.1} parent=5 // pred_check_branch
        %262 = sbr.rel (%p260) target = $region36
      $region35: #{tpu_custom_call.1} parent=5 // pred_region
        // Predicated region
        $region37: #{tpu_custom_call.1} parent=35 // pred_check
          %p263 = pneg %p43
        $region38: #{tpu_custom_call.1} parent=35 // pred_check_branch
          %265 = sbr.rel (%p263) target = $region40
        $region39: #{tpu_custom_call.1} parent=35 // pred_region
          %s266 = sand.u32 %s33, 1
          %s267 = scalar_lea.sflag [#allocation3], %s266
          %s268 = sand.u32 %s33, 1
          %s269 = smul.addr %s268, 32
          %s270 = scalar_lea.vmem [#allocation2], %s269
          %s271 = smul.u32 4, %s23
          %s273 = ssub.s32 512, 512
          %274 = vsyncadd %s267, %s273
          %s275 = smul.addr %s271, 128
          %s276 = scalar_lea.hbm %s0, %s275
          %s277 = sshll.u32 %s270, 4
          %s278 = int_to_ptr.vmem [resolvable:$true] %s277
          %283 = dma.hbm_to_vmem [thread:$0]  %s276, 512, %s278, %s267, 128, 128, 8
        $region40: #{tpu_custom_call.1} parent=35 // pred_fallthru
          _
      $region36: #{tpu_custom_call.1} parent=5 // pred_fallthru
        _
      %p284 = scmp.le.s32.totalorder 1, %s23
      %p285 = scmp.lt.s32.totalorder %s23, 3
      %p286 = pnand %p284, %p285
      %p287 = pneg %p286
      // Predicated region
      $region41: #{tpu_custom_call.1} parent=5 // pred_check
        _
      $region42: #{tpu_custom_call.1} parent=5 // pred_check_branch
        %289 = sbr.rel (%p286) target = $region44
      $region43: #{tpu_custom_call.1} parent=5 // pred_region
        %s290 = ssub.s32 %s23, 1
        %s291 = sand.u32 %s36, 1
        %s292 = scalar_lea.sflag [#allocation3], %s291
        %s293 = sand.u32 %s36, 1
        %s294 = smul.addr %s293, 32
        %s295 = scalar_lea.vmem [#allocation2], %s294
        // Predicated region
        $region45: #{tpu_custom_call.1} parent=43 // pred_check
          %p296 = pneg %p49
        $region46: #{tpu_custom_call.1} parent=43 // pred_check_branch
          %298 = sbr.rel (%p296) target = $region48
        $region47: #{tpu_custom_call.1} parent=43 // pred_region
          %299 = dma.done %s292, 512
        $region48: #{tpu_custom_call.1} parent=43 // pred_fallthru
          _
        // Predicated region
        $region49: #{tpu_custom_call.1} parent=43 // pred_check
          %p300 = pneg %p70
        $region50: #{tpu_custom_call.1} parent=43 // pred_check_branch
          %302 = sbr.rel (%p300) target = $region52
        $region51: #{tpu_custom_call.1} parent=43 // pred_region
          %303 = dma.done [#allocation6], 128
        $region52: #{tpu_custom_call.1} parent=43 // pred_fallthru
          _
        // Predicated region
        $region53: #{tpu_custom_call.1} parent=43 // pred_check
          %p304 = pneg %p91
        $region54: #{tpu_custom_call.1} parent=43 // pred_check_branch
          %306 = sbr.rel (%p304) target = $region56
        $region55: #{tpu_custom_call.1} parent=43 // pred_region
          %307 = dma.done [#allocation6], 256
        $region56: #{tpu_custom_call.1} parent=43 // pred_fallthru
          _
        // Predicated region
        $region57: #{tpu_custom_call.1} parent=43 // pred_check
          %p308 = pneg %p112
        $region58: #{tpu_custom_call.1} parent=43 // pred_check_branch
          %310 = sbr.rel (%p308) target = $region60
        $region59: #{tpu_custom_call.1} parent=43 // pred_region
          %311 = dma.done [#allocation9], 256
        $region60: #{tpu_custom_call.1} parent=43 // pred_fallthru
          _
        %s312 = sand.u32 %s36, 1
        %s313 = scalar_lea.sflag [#allocation3], %s312
        %s314 = sand.u32 %s36, 1
        %s315 = smul.addr %s314, 32
        %s316 = scalar_lea.vmem [#allocation2], %s315
        %p317 = pneg %p49
        %p318 = pneg %p46
        %p319 = pneg %p70
        %p320 = pneg %p67
        %p321 = pneg %p91
        %p322 = pneg %p88
        %p323 = pneg %p112
        %p324 = pneg %p109
        %p325 = pneg %p133
        %p326 = pneg %p130
        %p327 = pneg %p154
        %p328 = pneg %p151
        %p329 = pneg %p180
        %p330 = pneg %p177
        %s331 = sand.u32 %s167, 1
        %s332 = scalar_lea.sflag [#allocation4], %s331
        %s333 = sand.u32 %s167, 1
        %s334 = smul.addr %s333, 32
        %s335 = scalar_lea.vmem [#allocation10], %s334
        %p336 = pneg %p201
        %p337 = pneg %p198
        %s338 = smul.u32 4, %s28
        %s339 = smul.u32 4, %s28
        %p341 = scmp.eq.s32.totalorder %s28, 0
        // Predicated region
        $region61: #{tpu_custom_call.1} parent=43 // pred_check
          %p342 = pneg %p341
        $region62: #{tpu_custom_call.1} parent=43 // pred_check_branch
          %344 = sbr.rel (%p342) target = $region64
        $region63: #{tpu_custom_call.1} parent=43 // pred_region
          %v345 = vld [vmem:[#allocation5] sm:$0xff]
          %vm346 = vcmask 261120
          %347 = vst.msk [vmem:[#allocation11] sm:$0xff] %vm346, %v345
        $region64: #{tpu_custom_call.1} parent=43 // pred_fallthru
          _
        %v348 = vld [vmem:[#allocation7] sm:$0xf]
        %v349 = vld [vmem:[#allocation7 + $0x4] sm:$0xf]
        %v350 = vld [vmem:[#allocation7 + $0x8] sm:$0xf]
        %v351 = vld [vmem:[#allocation7 + $0xc] sm:$0xf]
        %v352 = vld [vmem:[#allocation8] sm:$0xf]
        %v353 = vld [vmem:[#allocation8 + $0x4] sm:$0xf]
        %v354 = vld [vmem:[#allocation8 + $0x8] sm:$0xf]
        %v355 = vld [vmem:[#allocation8 + $0xc] sm:$0xf]
        %v356 = vld [vmem:[%s4] sm:$0x1]
        %v357 = vld [vmem:[%s5] sm:$0x1]
        %v358 = vld [vmem:[%s295] sm:$0xff]
        %v359 = vld [vmem:[%s295 + $0x8] sm:$0xff]
        %v360 = vld [vmem:[%s295 + $0x10] sm:$0xff]
        %v361 = vld [vmem:[%s295 + $0x18] sm:$0xff]
        %v362 = vmax.f32 %v358, 0.0
        %v363 = vmax.f32 %v359, 0.0
        %v364 = vmax.f32 %v360, 0.0
        %v365 = vmax.f32 %v361, 0.0
        %v366 = vpack.c.bf16 %v363, %v362
        %v367 = vpack.c.bf16 %v365, %v364
        %v369 = vlaneseq
        %v370 = vshrl.u32 %v369, 7
        %v371 = vsub.s32 0, %v370
        %v372 = vrot.slane %v356, %v371
        %v378 = vunpack.c.l.b16 %v348
        %v379 = vunpack.c.l.b16 %v349
        %v380 = vunpack.c.l.b16 %v350
        %v381 = vunpack.c.l.b16 %v351
        %v382 = vpack.c.b16 %v379, %v378
        %v383 = vpack.c.b16 %v381, %v380
        %vm386 = vcmask 261120
        %v388 = vsel %vm386, %v366, 0
        %v391 = vsel %vm386, %v367, 0
        %393 = vmatprep.subr.bf16.mxu0 0
        %394 = vmatpush1.bf16.msra.mxu0 0
        %395 = vmatprep.subr.bf16.mxu0 0
        %396 = vmatpush1.bf16.msra.mxu0 0
        %397 = vmatprep.subr.bf16.mxu0 0
        %398 = vmatpush1.bf16.msra.mxu0 0
        %399 = vmatprep.subr.bf16.mxu0 0
        %400 = vmatpush1.bf16.msra.mxu0 0
        %401 = vmatprep.subr.bf16.mxu0 0
        %402 = vmatpush1.bf16.msra.mxu0 0
        %403 = vmatprep.subr.bf16.mxu0 0
        %404 = vmatpush1.bf16.msra.mxu0 0
        %405 = vmatprep.subr.bf16.mxu0 0
        %406 = vmatpush1.bf16.msra.mxu0 %v383
        %407 = vmatprep.subr.bf16.mxu0 0
        %408 = vmatpush1.bf16.msra.mxu0 %v382
        %409 = vmatprep.subr.bf16.mxu0 0
        %410 = vmatpush2.bf16.msra.mxu0 0
        %411 = vmatprep.subr.bf16.mxu0 0
        %412 = vmatpush2.bf16.msra.mxu0 0
        %413 = vmatprep.subr.bf16.mxu0 0
        %414 = vmatpush2.bf16.msra.mxu0 0
        %415 = vmatprep.subr.bf16.mxu0 0
        %416 = vmatpush2.bf16.msra.mxu0 0
        %417 = vmatprep.subr.bf16.mxu0 0
        %418 = vmatpush2.bf16.msra.mxu0 0
        %419 = vmatprep.subr.bf16.mxu0 0
        %420 = vmatpush2.bf16.msra.mxu0 0
        %421 = vmatprep.subr.bf16.mxu0 0
        %422 = vmatpush2.bf16.msra.mxu0 0
        %423 = vmatprep.subr.bf16.mxu0 0
        %424 = vmatpush2.bf16.msra.mxu0 0
        %425 = vmatprep.mubr.bf16.mxu0 0
        %426 = vmatmul.mubr.bf16.gmra.mxu0 %v388
        %v427 = vpop.f32.mrf.mxu0
        %v428 = vadd.f32 %v372, %v427
        %v429 = vpop.f32.mrf.mxu0
        %v430 = vpop.f32.mrf.mxu0
        %v431 = vadd.f32 %v372, %v430
        %v432 = vpop.f32.mrf.mxu0
        %433 = vmatprep.mubr.bf16.mxu0 0
        %434 = vmatmul.mubr.bf16.gmra.mxu0 %v391
        %v435 = vpop.f32.mrf.mxu0
        %v436 = vadd.f32 %v372, %v435
        %v437 = vpop.f32.mrf.mxu0
        %v438 = vpop.f32.mrf.mxu0
        %v439 = vadd.f32 %v372, %v438
        %v440 = vpop.f32.mrf.mxu0
        %441 = vdwg.mxu0
        %v442 = vld [vmem:[#allocation11] sm:$0xff]
        %v443 = vpack.c.bf16 %v442, %v442
        %v445 = vlaneseq
        %v446 = vshrl.u32 %v445, 7
        %v447 = vsub.s32 0, %v446
        %v448 = vrot.slane %v357, %v447
        %v454 = vunpack.c.l.b16 %v352
        %v455 = vunpack.c.l.b16 %v353
        %v456 = vunpack.c.l.b16 %v354
        %v457 = vunpack.c.l.b16 %v355
        %v458 = vpack.c.b16 %v455, %v454
        %v459 = vpack.c.b16 %v457, %v456
        %v463 = vsel %vm386, %v443, 0
        %465 = vmatprep.subr.bf16.mxu0 0
        %466 = vmatpush1.bf16.msra.mxu0 0
        %467 = vmatprep.subr.bf16.mxu0 0
        %468 = vmatpush1.bf16.msra.mxu0 0
        %469 = vmatprep.subr.bf16.mxu0 0
        %470 = vmatpush1.bf16.msra.mxu0 0
        %471 = vmatprep.subr.bf16.mxu0 0
        %472 = vmatpush1.bf16.msra.mxu0 0
        %473 = vmatprep.subr.bf16.mxu0 0
        %474 = vmatpush1.bf16.msra.mxu0 0
        %475 = vmatprep.subr.bf16.mxu0 0
        %476 = vmatpush1.bf16.msra.mxu0 0
        %477 = vmatprep.subr.bf16.mxu0 0
        %478 = vmatpush1.bf16.msra.mxu0 %v459
        %479 = vmatprep.subr.bf16.mxu0 0
        %480 = vmatpush1.bf16.msra.mxu0 %v458
        %481 = vmatprep.subr.bf16.mxu0 0
        %482 = vmatpush2.bf16.msra.mxu0 0
        %483 = vmatprep.subr.bf16.mxu0 0
        %484 = vmatpush2.bf16.msra.mxu0 0
        %485 = vmatprep.subr.bf16.mxu0 0
        %486 = vmatpush2.bf16.msra.mxu0 0
        %487 = vmatprep.subr.bf16.mxu0 0
        %488 = vmatpush2.bf16.msra.mxu0 0
        %489 = vmatprep.subr.bf16.mxu0 0
        %490 = vmatpush2.bf16.msra.mxu0 0
        %491 = vmatprep.subr.bf16.mxu0 0
        %492 = vmatpush2.bf16.msra.mxu0 0
        %493 = vmatprep.subr.bf16.mxu0 0
        %494 = vmatpush2.bf16.msra.mxu0 0
        %495 = vmatprep.subr.bf16.mxu0 0
        %496 = vmatpush2.bf16.msra.mxu0 0
        %497 = vmatprep.mubr.bf16.mxu0 0
        %498 = vmatmul.mubr.bf16.gmra.mxu0 %v463
        %v499 = vpop.f32.mrf.mxu0
        %v500 = vadd.f32 %v448, %v499
        %v501 = vpop.f32.mrf.mxu0
        %v502 = vpop.f32.mrf.mxu0
        %v503 = vpop.f32.mrf.mxu0
        %504 = vdwg.mxu0
        %v505 = vadd.f32 %v428, %v500
        %v506 = vxor.u32 %v505, 2147483648
        %v507 = vmul.f32 %v506, 1.442695
        %v508 = vpow.pop %v507
        %v509 = vadd.f32 %v508, 1.0
        %v510 = vrcp.pop %v509
        %v511 = vmul.f32 1.0, %v510
        %513 = vrot.lane.b32.xlu0 %v500, 64
        %v514 = vpop.permute.xlu0 %513
        %v516 = vmul.f32 %v511, %v514
        %518 = vrot.lane.b32.xlu0 %v516, 64
        %v519 = vpop.permute.xlu0 %518
        %v521 = vadd.f32 %v428, %v519
        %v522 = vtanh.pop %v521
        %v523 = vsub.f32 1.0, %v511
        %525 = vrot.lane.b32.xlu0 %v522, 96
        %v526 = vpop.permute.xlu0 %525
        %v528 = vmul.f32 %v523, %v526
        %530 = vrot.lane.b32.xlu0 %v442, 32
        %v531 = vpop.permute.xlu0 %530
        %v533 = vmul.f32 %v511, %v531
        %v534 = vadd.f32 %v528, %v533
        %536 = vrot.lane.b32.xlu0 %v534, 96
        %v537 = vpop.permute.xlu0 %536
        %539 = vst.msk [vmem:[%s335] sm:$0xff] %vm386, %v537
        %v540 = vpack.c.bf16 %v534, %v534
        %542 = vrot.lane.b32.xlu0 %v540, 96
        %v543 = vpop.permute.xlu0 %542
        %v545 = vsel %vm386, %v543, 0
        %547 = vmatprep.subr.bf16.mxu0 0
        %548 = vmatpush1.bf16.msra.mxu0 0
        %549 = vmatprep.subr.bf16.mxu0 0
        %550 = vmatpush1.bf16.msra.mxu0 0
        %551 = vmatprep.subr.bf16.mxu0 0
        %552 = vmatpush1.bf16.msra.mxu0 0
        %553 = vmatprep.subr.bf16.mxu0 0
        %554 = vmatpush1.bf16.msra.mxu0 0
        %555 = vmatprep.subr.bf16.mxu0 0
        %556 = vmatpush1.bf16.msra.mxu0 0
        %557 = vmatprep.subr.bf16.mxu0 0
        %558 = vmatpush1.bf16.msra.mxu0 0
        %559 = vmatprep.subr.bf16.mxu0 0
        %560 = vmatpush1.bf16.msra.mxu0 %v459
        %561 = vmatprep.subr.bf16.mxu0 0
        %562 = vmatpush1.bf16.msra.mxu0 %v458
        %563 = vmatprep.subr.bf16.mxu0 0
        %564 = vmatpush2.bf16.msra.mxu0 0
        %565 = vmatprep.subr.bf16.mxu0 0
        %566 = vmatpush2.bf16.msra.mxu0 0
        %567 = vmatprep.subr.bf16.mxu0 0
        %568 = vmatpush2.bf16.msra.mxu0 0
        %569 = vmatprep.subr.bf16.mxu0 0
        %570 = vmatpush2.bf16.msra.mxu0 0
        %571 = vmatprep.subr.bf16.mxu0 0
        %572 = vmatpush2.bf16.msra.mxu0 0
        %573 = vmatprep.subr.bf16.mxu0 0
        %574 = vmatpush2.bf16.msra.mxu0 0
        %575 = vmatprep.subr.bf16.mxu0 0
        %576 = vmatpush2.bf16.msra.mxu0 0
        %577 = vmatprep.subr.bf16.mxu0 0
        %578 = vmatpush2.bf16.msra.mxu0 0
        %579 = vmatprep.mubr.bf16.mxu0 0
        %580 = vmatmul.mubr.bf16.gmra.mxu0 %v545
        %v581 = vpop.f32.mrf.mxu0
        %v582 = vadd.f32 %v448, %v581
        %v583 = vpop.f32.mrf.mxu0
        %v584 = vpop.f32.mrf.mxu0
        %v585 = vpop.f32.mrf.mxu0
        %586 = vdwg.mxu0
        %v587 = vadd.f32 %v431, %v582
        %v588 = vxor.u32 %v587, 2147483648
        %v589 = vmul.f32 %v588, 1.442695
        %v590 = vpow.pop %v589
        %v591 = vadd.f32 %v590, 1.0
        %v592 = vrcp.pop %v591
        %v593 = vmul.f32 1.0, %v592
        %595 = vrot.lane.b32.xlu0 %v582, 64
        %v596 = vpop.permute.xlu0 %595
        %v598 = vmul.f32 %v593, %v596
        %600 = vrot.lane.b32.xlu0 %v598, 64
        %v601 = vpop.permute.xlu0 %600
        %v603 = vadd.f32 %v431, %v601
        %v604 = vtanh.pop %v603
        %v605 = vsub.f32 1.0, %v593
        %607 = vrot.lane.b32.xlu0 %v604, 96
        %v608 = vpop.permute.xlu0 %607
        %v610 = vmul.f32 %v605, %v608
        %v611 = vmul.f32 %v593, %v534
        %v612 = vadd.f32 %v610, %v611
        %614 = vrot.lane.b32.xlu0 %v612, 96
        %v615 = vpop.permute.xlu0 %614
        %s617 = scalar_lea.vmem %s335, 8 [#allocation10]
        %618 = vst.msk [vmem:[%s617] sm:$0xff] %vm386, %v615
        %v619 = vpack.c.bf16 %v612, %v612
        %621 = vrot.lane.b32.xlu0 %v619, 96
        %v622 = vpop.permute.xlu0 %621
        %v624 = vsel %vm386, %v622, 0
        %626 = vmatprep.subr.bf16.mxu0 0
        %627 = vmatpush1.bf16.msra.mxu0 0
        %628 = vmatprep.subr.bf16.mxu0 0
        %629 = vmatpush1.bf16.msra.mxu0 0
        %630 = vmatprep.subr.bf16.mxu0 0
        %631 = vmatpush1.bf16.msra.mxu0 0
        %632 = vmatprep.subr.bf16.mxu0 0
        %633 = vmatpush1.bf16.msra.mxu0 0
        %634 = vmatprep.subr.bf16.mxu0 0
        %635 = vmatpush1.bf16.msra.mxu0 0
        %636 = vmatprep.subr.bf16.mxu0 0
        %637 = vmatpush1.bf16.msra.mxu0 0
        %638 = vmatprep.subr.bf16.mxu0 0
        %639 = vmatpush1.bf16.msra.mxu0 %v459
        %640 = vmatprep.subr.bf16.mxu0 0
        %641 = vmatpush1.bf16.msra.mxu0 %v458
        %642 = vmatprep.subr.bf16.mxu0 0
        %643 = vmatpush2.bf16.msra.mxu0 0
        %644 = vmatprep.subr.bf16.mxu0 0
        %645 = vmatpush2.bf16.msra.mxu0 0
        %646 = vmatprep.subr.bf16.mxu0 0
        %647 = vmatpush2.bf16.msra.mxu0 0
        %648 = vmatprep.subr.bf16.mxu0 0
        %649 = vmatpush2.bf16.msra.mxu0 0
        %650 = vmatprep.subr.bf16.mxu0 0
        %651 = vmatpush2.bf16.msra.mxu0 0
        %652 = vmatprep.subr.bf16.mxu0 0
        %653 = vmatpush2.bf16.msra.mxu0 0
        %654 = vmatprep.subr.bf16.mxu0 0
        %655 = vmatpush2.bf16.msra.mxu0 0
        %656 = vmatprep.subr.bf16.mxu0 0
        %657 = vmatpush2.bf16.msra.mxu0 0
        %658 = vmatprep.mubr.bf16.mxu0 0
        %659 = vmatmul.mubr.bf16.gmra.mxu0 %v624
        %v660 = vpop.f32.mrf.mxu0
        %v661 = vadd.f32 %v448, %v660
        %v662 = vpop.f32.mrf.mxu0
        %v663 = vpop.f32.mrf.mxu0
        %v664 = vpop.f32.mrf.mxu0
        %665 = vdwg.mxu0
        %v666 = vadd.f32 %v436, %v661
        %v667 = vxor.u32 %v666, 2147483648
        %v668 = vmul.f32 %v667, 1.442695
        %v669 = vpow.pop %v668
        %v670 = vadd.f32 %v669, 1.0
        %v671 = vrcp.pop %v670
        %v672 = vmul.f32 1.0, %v671
        %674 = vrot.lane.b32.xlu0 %v661, 64
        %v675 = vpop.permute.xlu0 %674
        %v677 = vmul.f32 %v672, %v675
        %679 = vrot.lane.b32.xlu0 %v677, 64
        %v680 = vpop.permute.xlu0 %679
        %v682 = vadd.f32 %v436, %v680
        %v683 = vtanh.pop %v682
        %v684 = vsub.f32 1.0, %v672
        %686 = vrot.lane.b32.xlu0 %v683, 96
        %v687 = vpop.permute.xlu0 %686
        %v689 = vmul.f32 %v684, %v687
        %v690 = vmul.f32 %v672, %v612
        %v691 = vadd.f32 %v689, %v690
        %693 = vrot.lane.b32.xlu0 %v691, 96
        %v694 = vpop.permute.xlu0 %693
        %s696 = scalar_lea.vmem %s335, 16 [#allocation10]
        %697 = vst.msk [vmem:[%s696] sm:$0xff] %vm386, %v694
        %v698 = vpack.c.bf16 %v691, %v691
        %700 = vrot.lane.b32.xlu0 %v698, 96
        %v701 = vpop.permute.xlu0 %700
        %v703 = vsel %vm386, %v701, 0
        %705 = vmatprep.subr.bf16.mxu0 0
        %706 = vmatpush1.bf16.msra.mxu0 0
        %707 = vmatprep.subr.bf16.mxu0 0
        %708 = vmatpush1.bf16.msra.mxu0 0
        %709 = vmatprep.subr.bf16.mxu0 0
        %710 = vmatpush1.bf16.msra.mxu0 0
        %711 = vmatprep.subr.bf16.mxu0 0
        %712 = vmatpush1.bf16.msra.mxu0 0
        %713 = vmatprep.subr.bf16.mxu0 0
        %714 = vmatpush1.bf16.msra.mxu0 0
        %715 = vmatprep.subr.bf16.mxu0 0
        %716 = vmatpush1.bf16.msra.mxu0 0
        %717 = vmatprep.subr.bf16.mxu0 0
        %718 = vmatpush1.bf16.msra.mxu0 %v459
        %719 = vmatprep.subr.bf16.mxu0 0
        %720 = vmatpush1.bf16.msra.mxu0 %v458
        %721 = vmatprep.subr.bf16.mxu0 0
        %722 = vmatpush2.bf16.msra.mxu0 0
        %723 = vmatprep.subr.bf16.mxu0 0
        %724 = vmatpush2.bf16.msra.mxu0 0
        %725 = vmatprep.subr.bf16.mxu0 0
        %726 = vmatpush2.bf16.msra.mxu0 0
        %727 = vmatprep.subr.bf16.mxu0 0
        %728 = vmatpush2.bf16.msra.mxu0 0
        %729 = vmatprep.subr.bf16.mxu0 0
        %730 = vmatpush2.bf16.msra.mxu0 0
        %731 = vmatprep.subr.bf16.mxu0 0
        %732 = vmatpush2.bf16.msra.mxu0 0
        %733 = vmatprep.subr.bf16.mxu0 0
        %734 = vmatpush2.bf16.msra.mxu0 0
        %735 = vmatprep.subr.bf16.mxu0 0
        %736 = vmatpush2.bf16.msra.mxu0 0
        %737 = vmatprep.mubr.bf16.mxu0 0
        %738 = vmatmul.mubr.bf16.gmra.mxu0 %v703
        %v739 = vpop.f32.mrf.mxu0
        %v740 = vadd.f32 %v448, %v739
        %v741 = vpop.f32.mrf.mxu0
        %v742 = vpop.f32.mrf.mxu0
        %v743 = vpop.f32.mrf.mxu0
        %744 = vdwg.mxu0
        %v745 = vadd.f32 %v439, %v740
        %v746 = vxor.u32 %v745, 2147483648
        %v747 = vmul.f32 %v746, 1.442695
        %v748 = vpow.pop %v747
        %v749 = vadd.f32 %v748, 1.0
        %v750 = vrcp.pop %v749
        %v751 = vmul.f32 1.0, %v750
        %753 = vrot.lane.b32.xlu0 %v740, 64
        %v754 = vpop.permute.xlu0 %753
        %v756 = vmul.f32 %v751, %v754
        %758 = vrot.lane.b32.xlu0 %v756, 64
        %v759 = vpop.permute.xlu0 %758
        %v761 = vadd.f32 %v439, %v759
        %v762 = vtanh.pop %v761
        %v763 = vsub.f32 1.0, %v751
        %765 = vrot.lane.b32.xlu0 %v762, 96
        %v766 = vpop.permute.xlu0 %765
        %v768 = vmul.f32 %v763, %v766
        %v769 = vmul.f32 %v751, %v691
        %v770 = vadd.f32 %v768, %v769
        %772 = vrot.lane.b32.xlu0 %v770, 96
        %v773 = vpop.permute.xlu0 %772
        %s775 = scalar_lea.vmem %s335, 24 [#allocation10]
        %776 = vst.msk [vmem:[%s775] sm:$0xff] %vm386, %v773
        %777 = vst.msk [vmem:[#allocation11] sm:$0xff] %vm386, %v773
        %s778 = sand.u32 %s167, 1
        %s779 = scalar_lea.sflag [#allocation4], %s778
        %s780 = sand.u32 %s167, 1
        %s781 = smul.addr %s780, 32
        %s782 = scalar_lea.vmem [#allocation10], %s781
        // Predicated region
        $region65: #{tpu_custom_call.1} parent=43 // pred_check
          %p783 = pneg %p177
        $region66: #{tpu_custom_call.1} parent=43 // pred_check_branch
          %785 = sbr.rel (%p783) target = $region68
        $region67: #{tpu_custom_call.1} parent=43 // pred_region
          %s786 = smul.u32 4, %s28
          %s788 = ssub.s32 512, 512
          %789 = vsyncadd %s779, %s788
          %s790 = smul.addr %s786, 128
          %s791 = scalar_lea.hbm %s6, %s790
          %s792 = sshll.u32 %s782, 4
          %s793 = int_to_ptr.vmem [resolvable:$true] %s792
          %798 = dma.vmem_to_hbm [thread:$0]  %s793, 512, %s791, %s779, 128, 128, 8
        $region68: #{tpu_custom_call.1} parent=43 // pred_fallthru
          _
        // Predicated region
        $region69: #{tpu_custom_call.1} parent=43 // pred_check
          %p799 = pneg %p198
        $region70: #{tpu_custom_call.1} parent=43 // pred_check_branch
          %801 = sbr.rel (%p799) target = $region72
        $region71: #{tpu_custom_call.1} parent=43 // pred_region
          %s803 = ssub.s32 128, 128
          %804 = vsyncadd [#allocation12], %s803
          %s806 = sshll.u32 [#allocation11], 4
          %s807 = int_to_ptr.vmem [resolvable:$true] %s806
          %809 = dma.vmem_to_hbm [thread:$0]  %s807, 128, %s7, [#allocation12]
        $region72: #{tpu_custom_call.1} parent=43 // pred_fallthru
          _
        // Predicated region
        $region73: #{tpu_custom_call.1} parent=43 // pred_check
          %p810 = pneg %p198
        $region74: #{tpu_custom_call.1} parent=43 // pred_check_branch
          %812 = sbr.rel (%p810) target = $region76
        $region75: #{tpu_custom_call.1} parent=43 // pred_region
          %813 = dma.done [#allocation12], 128
        $region76: #{tpu_custom_call.1} parent=43 // pred_fallthru
          _
      $region44: #{tpu_custom_call.1} parent=5 // pred_fallthru
        _
      %p814 = scmp.le.s32.totalorder 2, %s23
      // Predicated region
      $region77: #{tpu_custom_call.1} parent=5 // pred_check
        %p815 = pneg %p814
      $region78: #{tpu_custom_call.1} parent=5 // pred_check_branch
        %817 = sbr.rel (%p815) target = $region80
      $region79: #{tpu_custom_call.1} parent=5 // pred_region
        %s818 = ssub.s32 %s23, 2
        // Predicated region
        $region81: #{tpu_custom_call.1} parent=79 // pred_check
          %p819 = pneg %p183
        $region82: #{tpu_custom_call.1} parent=79 // pred_check_branch
          %821 = sbr.rel (%p819) target = $region84
        $region83: #{tpu_custom_call.1} parent=79 // pred_region
          %s822 = sand.u32 %s168, 1
          %s823 = scalar_lea.sflag [#allocation4], %s822
          %s824 = sand.u32 %s168, 1
          %s825 = smul.addr %s824, 32
          %s826 = scalar_lea.vmem [#allocation10], %s825
          %827 = dma.done %s823, 512
        $region84: #{tpu_custom_call.1} parent=79 // pred_fallthru
          _
      $region80: #{tpu_custom_call.1} parent=5 // pred_fallthru
        _
    $region6: #{tpu_custom_call.1} parent=1 // loop_footer
      %s27 = sadd.s32 1, %s23
    $region7: #{tpu_custom_call.1} parent=1 // loop_footer_branch
      %22 = sbr.rel target = $region3
    $region8: #{tpu_custom_call.1} parent=1 // loop_exit
      _
    %828 = vsyncpa [#allocation3], 1
    %s829 = scalar_lea.sflag [#allocation3], 1
    %830 = vsyncpa %s829, 1
    %831 = vsyncpa [#allocation6], 1
    %832 = vsyncpa [#allocation9], 1
    %833 = vsyncpa [#allocation4], 1
    %s834 = scalar_lea.sflag [#allocation4], 1
    %835 = vsyncpa %s834, 1
    %836 = vsyncpa [#allocation12], 1

</llo_original>
